<compile_context>
chip_gen: v5e
topology: v5e:2x2
jax: 0.10.0
libtpu: 0.0.40
codegen_flags: <defaults>
</compile_context>

<pallas_src>
import jax
import jax.numpy as jnp
from jax import lax
from jax.experimental import pallas as pl
from jax.experimental.pallas import tpu as pltpu


def _cross_attention_kernel(q_ref, k_ref, v_ref, wk_ref, bk_ref, wv_ref, bv_ref,
                            wo_ref, bo_ref, o_ref):
    """One grid step = one batch-group.

    q_ref:  (Bg, Lq, D1)
    k_ref:  (Bg*Lk, D2)   batch-folded keys
    v_ref:  (Bg*Lk, D2)   batch-folded values
    wk_ref: (D2, D1)      scale * Wk^T   (1/sqrt(dim1) folded in)
    bk_ref: (1, D1)       scale * bk
    wv_ref: (D2, D1)      Wv^T
    bv_ref: (1, D1)
    wo_ref: (D1, D1)      Wo^T
    bo_ref: (1, D1)
    o_ref:  (Bg, Lq, D1)
    """
    bg, lq, d1 = q_ref.shape
    lk = k_ref.shape[0] // bg

    # K / V input projections on batch-folded (Bg*Lk, D2) operands (one MXU call each).
    k_proj = (jnp.dot(k_ref[...], wk_ref[...], preferred_element_type=jnp.float32)
              + bk_ref[...]).reshape(bg, lk, d1)
    v_proj = (jnp.dot(v_ref[...], wv_ref[...], preferred_element_type=jnp.float32)
              + bv_ref[...]).reshape(bg, lk, d1)

    # scores = Q @ K_proj^T (already scaled) — contract last dims, batch dim 0, no .T.
    scores = lax.dot_general(
        q_ref[...], k_proj,
        dimension_numbers=(((2,), (2,)), ((0,), (0,))),
        preferred_element_type=jnp.float32)

    # Numerically stable softmax over the key axis (exact normalization).
    scores = scores - jnp.max(scores, axis=-1, keepdims=True)
    p = jnp.exp(scores)
    probs = p * pl.reciprocal(jnp.sum(p, axis=-1, keepdims=True))

    # context = probs @ V_proj
    context = lax.dot_general(
        probs, v_proj,
        dimension_numbers=(((2,), (1,)), ((0,), (0,))),
        preferred_element_type=jnp.float32)

    # Output projection on the batch-folded (Bg*Lq, D1) operand.
    out = (jnp.dot(context.reshape(bg * lq, d1), wo_ref[...],
                   preferred_element_type=jnp.float32) + bo_ref[...])
    o_ref[...] = out.reshape(bg, lq, d1).astype(o_ref.dtype)


def prepare_cross_attention_params(params, dim1, dtype=jnp.float32):
    """One-time parameter prep, hoisted out of the per-call path.

    nn.Linear weights are (out, in); we pre-transpose and fold the 1/sqrt(dim1)
    score scale into Wk^T / bk (exact in f32).
    """
    scale = 1.0 / (float(dim1) ** 0.5)
    return {
        "wk_t": (params["wk"].T * scale).astype(dtype),       # (D2, D1)
        "bk":   (params["bk"] * scale).astype(dtype).reshape(1, dim1),
        "wv_t": params["wv"].T.astype(dtype),                 # (D2, D1)
        "bv":   params["bv"].astype(dtype).reshape(1, dim1),
        "wo_t": params["wo"].T.astype(dtype),                 # (D1, D1)
        "bo":   params["bo"].astype(dtype).reshape(1, dim1),
    }


def _num_tensorcores():
    """2 on v7x (2 TCs/chip), else 1 (v5e/v6e)."""
    try:
        kind = jax.devices()[0].device_kind.lower()
    except Exception:
        return 1
    return 2 if ("v7" in kind or "7x" in kind) else 1


def cross_attention_pallas(Q, K, V, prepped, *, batch_grid=None):
    """Q: [B, Lq, dim1], K/V: [B, Lk, dim2] -> [B, Lq, dim1]."""
    B, Lq, D1 = Q.shape
    _, Lk, D2 = K.shape

    if batch_grid is None:
        ntc = _num_tensorcores()
        batch_grid = ntc if (ntc > 1 and B % ntc == 0) else 1
    G = batch_grid
    Bg = B // G

    # Layout-free reshapes (merge leading, non-lane axes only).
    K2 = K.reshape(B * Lk, D2)
    V2 = V.reshape(B * Lk, D2)

    full = lambda shape: pl.BlockSpec(shape, lambda g: (0,) * len(shape))

    return pl.pallas_call(
        _cross_attention_kernel,
        out_shape=jax.ShapeDtypeStruct((B, Lq, D1), Q.dtype),
        grid=(G,),
        in_specs=[
            pl.BlockSpec((Bg, Lq, D1), lambda g: (g, 0, 0)),      # Q
            pl.BlockSpec((Bg * Lk, D2), lambda g: (g, 0)),        # K (batch-folded)
            pl.BlockSpec((Bg * Lk, D2), lambda g: (g, 0)),        # V (batch-folded)
            full((D2, D1)),                                       # scale * Wk^T
            full((1, D1)),                                        # scale * bk
            full((D2, D1)),                                       # Wv^T
            full((1, D1)),                                        # bv
            full((D1, D1)),                                       # Wo^T
            full((1, D1)),                                        # bo
        ],
        out_specs=pl.BlockSpec((Bg, Lq, D1), lambda g: (g, 0, 0)),
        compiler_params=pltpu.CompilerParams(
            dimension_semantics=(("parallel",) if G > 1 else ("arbitrary",))),
    )(Q, K2, V2, prepped["wk_t"], prepped["bk"], prepped["wv_t"], prepped["bv"],
      prepped["wo_t"], prepped["bo"])


def cross_attention_ref(Q, K, V, params, dim1):
    k_proj = K @ params["wk"].T + params["bk"]
    v_proj = V @ params["wv"].T + params["bv"]
    scores = jnp.einsum("bqd,bkd->bqk", Q, k_proj) / (dim1 ** 0.5)
    probs = jax.nn.softmax(scores, axis=-1)
    context = jnp.einsum("bqk,bkd->bqd", probs, v_proj)
    return context @ params["wo"].T + params["bo"]


if __name__ == "__main__":
    # Small shapes consistent with the module: dim1=32 (Q feature), dim2=16 (K/V feature).
    B, Lq, Lk, dim1, dim2 = 2, 8, 8, 32, 16

    key = jax.random.PRNGKey(0)
    kq, kk, kvk, k1, k2, k3, k4, k5, k6 = jax.random.split(key, 9)

    Q = jax.random.normal(kq, (B, Lq, dim1), dtype=jnp.float32)
    K = jax.random.normal(kk, (B, Lk, dim2), dtype=jnp.float32)
    V = jax.random.normal(kvk, (B, Lk, dim2), dtype=jnp.float32)

    # nn.Linear shapes: weight (out, in), bias (out,).
    params = {
        "wk": jax.random.normal(k1, (dim1, dim2), dtype=jnp.float32) * 0.1,
        "bk": jax.random.normal(k2, (dim1,), dtype=jnp.float32) * 0.1,
        "wv": jax.random.normal(k3, (dim1, dim2), dtype=jnp.float32) * 0.1,
        "bv": jax.random.normal(k4, (dim1,), dtype=jnp.float32) * 0.1,
        "wo": jax.random.normal(k5, (dim1, dim1), dtype=jnp.float32) * 0.1,
        "bo": jax.random.normal(k6, (dim1,), dtype=jnp.float32) * 0.1,
    }
    # TODO(synk): nn.Dropout is constructed in __init__ but never applied in forward,
    # so it is intentionally omitted here.

    prepped = prepare_cross_attention_params(params, dim1)  # one-time, outside hot path

    out = cross_attention_pallas(Q, K, V, prepped)
    out = jax.block_until_ready(out)

    ref = cross_attention_ref(Q, K, V, params, dim1)
    assert out.shape == (B, Lq, dim1)
    assert jnp.allclose(out, ref, atol=1e-4, rtol=1e-4), float(jnp.max(jnp.abs(out - ref)))

    print("KERNEL_OK")
</pallas_src>

<mosaic_0001>
module attributes {stable_mosaic.version = 11 : i64} {
  func.func @_cross_attention_kernel(%arg0: i32, %arg1: memref<2x8x32xf32, #tpu.memory_space<vmem>>, %arg2: memref<16x16xf32, #tpu.memory_space<vmem>>, %arg3: memref<16x16xf32, #tpu.memory_space<vmem>>, %arg4: memref<16x32xf32, #tpu.memory_space<vmem>>, %arg5: memref<1x32xf32, #tpu.memory_space<vmem>>, %arg6: memref<16x32xf32, #tpu.memory_space<vmem>>, %arg7: memref<1x32xf32, #tpu.memory_space<vmem>>, %arg8: memref<32x32xf32, #tpu.memory_space<vmem>>, %arg9: memref<1x32xf32, #tpu.memory_space<vmem>>, %arg10: memref<2x8x32xf32, #tpu.memory_space<vmem>>) attributes {dimension_semantics = [#tpu.dimension_semantics<arbitrary>], iteration_bounds = array<i64: 1>, scalar_prefetch = 0 : i64, scratch_operands = 0 : i64, tpu.core_type = #tpu.core_type<tc>, window_params = [{transform_indices = @transform_0, window_bounds = array<i64: 2, 8, 32>}, {transform_indices = @transform_1, window_bounds = array<i64: 16, 16>}, {transform_indices = @transform_2, window_bounds = array<i64: 16, 16>}, {pipeline_mode = #tpu.pipeline_mode<synchronous>, transform_indices = @transform_3, window_bounds = array<i64: 16, 32>}, {pipeline_mode = #tpu.pipeline_mode<synchronous>, transform_indices = @transform_4, window_bounds = array<i64: 1, 32>}, {pipeline_mode = #tpu.pipeline_mode<synchronous>, transform_indices = @transform_5, window_bounds = array<i64: 16, 32>}, {pipeline_mode = #tpu.pipeline_mode<synchronous>, transform_indices = @transform_6, window_bounds = array<i64: 1, 32>}, {pipeline_mode = #tpu.pipeline_mode<synchronous>, transform_indices = @transform_7, window_bounds = array<i64: 32, 32>}, {pipeline_mode = #tpu.pipeline_mode<synchronous>, transform_indices = @transform_8, window_bounds = array<i64: 1, 32>}, {transform_indices = @transform_9, window_bounds = array<i64: 2, 8, 32>}]} {
    %c0 = arith.constant 0 : index
    %c0_0 = arith.constant 0 : index
    %0 = vector.load %arg2[%c0, %c0_0] : memref<16x16xf32, #tpu.memory_space<vmem>>, vector<16x16xf32>
    %c0_1 = arith.constant 0 : index
    %c0_2 = arith.constant 0 : index
    %1 = vector.load %arg4[%c0_1, %c0_2] : memref<16x32xf32, #tpu.memory_space<vmem>>, vector<16x32xf32>
    %cst = arith.constant dense<0.000000e+00> : vector<16x32xf32>
    %2 = tpu.matmul %0, %1, %cst {dimension_numbers = #tpu.dot_dimension_numbers<[1], [0], [0], [1], [0, 0, 1, 1], [], []>} : vector<16x16xf32>, vector<16x32xf32>, vector<16x32xf32> -> vector<16x32xf32>
    %c0_3 = arith.constant 0 : index
    %c0_4 = arith.constant 0 : index
    %3 = vector.load %arg5[%c0_3, %c0_4] : memref<1x32xf32, #tpu.memory_space<vmem>>, vector<1x32xf32>
    %4 = vector.broadcast %3 : vector<1x32xf32> to vector<16x32xf32>
    %5 = arith.addf %2, %4 : vector<16x32xf32>
    %6 = vector.shape_cast %5 : vector<16x32xf32> to vector<2x8x32xf32>
    %c0_5 = arith.constant 0 : index
    %c0_6 = arith.constant 0 : index
    %7 = vector.load %arg3[%c0_5, %c0_6] : memref<16x16xf32, #tpu.memory_space<vmem>>, vector<16x16xf32>
    %c0_7 = arith.constant 0 : index
    %c0_8 = arith.constant 0 : index
    %8 = vector.load %arg6[%c0_7, %c0_8] : memref<16x32xf32, #tpu.memory_space<vmem>>, vector<16x32xf32>
    %cst_9 = arith.constant dense<0.000000e+00> : vector<16x32xf32>
    %9 = tpu.matmul %7, %8, %cst_9 {dimension_numbers = #tpu.dot_dimension_numbers<[1], [0], [0], [1], [0, 0, 1, 1], [], []>} : vector<16x16xf32>, vector<16x32xf32>, vector<16x32xf32> -> vector<16x32xf32>
    %c0_10 = arith.constant 0 : index
    %c0_11 = arith.constant 0 : index
    %10 = vector.load %arg7[%c0_10, %c0_11] : memref<1x32xf32, #tpu.memory_space<vmem>>, vector<1x32xf32>
    %11 = vector.broadcast %10 : vector<1x32xf32> to vector<16x32xf32>
    %12 = arith.addf %9, %11 : vector<16x32xf32>
    %13 = vector.shape_cast %12 : vector<16x32xf32> to vector<2x8x32xf32>
    %c0_12 = arith.constant 0 : index
    %c0_13 = arith.constant 0 : index
    %c0_14 = arith.constant 0 : index
    %14 = vector.load %arg1[%c0_12, %c0_13, %c0_14] : memref<2x8x32xf32, #tpu.memory_space<vmem>>, vector<2x8x32xf32>
    %cst_15 = arith.constant dense<0.000000e+00> : vector<2x8x8xf32>
    %15 = tpu.matmul %14, %6, %cst_15 {dimension_numbers = #tpu.dot_dimension_numbers<[2], [2], [1], [1], [0, 0, 0, 1, 1, 1], [0], [0]>} : vector<2x8x32xf32>, vector<2x8x32xf32>, vector<2x8x8xf32> -> vector<2x8x8xf32>
    %cst_16 = arith.constant dense<0xFF800000> : vector<2x8xf32>
    %16 = vector.multi_reduction <maximumf>, %15, %cst_16 [2] : vector<2x8x8xf32> to vector<2x8xf32>
    %17 = vector.shape_cast %16 : vector<2x8xf32> to vector<2x8x1xf32>
    %18 = vector.broadcast %17 : vector<2x8x1xf32> to vector<2x8x8xf32>
    %19 = arith.subf %15, %18 : vector<2x8x8xf32>
    %20 = math.exp %19 : vector<2x8x8xf32>
    %cst_17 = arith.constant dense<0.000000e+00> : vector<2x8xf32>
    %21 = vector.multi_reduction <add>, %20, %cst_17 [2] : vector<2x8x8xf32> to vector<2x8xf32>
    %22 = vector.shape_cast %21 : vector<2x8xf32> to vector<2x8x1xf32>
    %23 = tpu.reciprocal %22 : vector<2x8x1xf32> -> vector<2x8x1xf32>
    %24 = vector.broadcast %23 : vector<2x8x1xf32> to vector<2x8x8xf32>
    %25 = arith.mulf %20, %24 : vector<2x8x8xf32>
    %cst_18 = arith.constant dense<0.000000e+00> : vector<2x8x32xf32>
    %26 = tpu.matmul %25, %13, %cst_18 {dimension_numbers = #tpu.dot_dimension_numbers<[2], [1], [1], [2], [0, 0, 0, 1, 1, 2], [0], [0]>} : vector<2x8x8xf32>, vector<2x8x32xf32>, vector<2x8x32xf32> -> vector<2x8x32xf32>
    %27 = vector.shape_cast %26 : vector<2x8x32xf32> to vector<16x32xf32>
    %c0_19 = arith.constant 0 : index
    %c0_20 = arith.constant 0 : index
    %28 = vector.load %arg8[%c0_19, %c0_20] : memref<32x32xf32, #tpu.memory_space<vmem>>, vector<32x32xf32>
    %cst_21 = arith.constant dense<0.000000e+00> : vector<16x32xf32>
    %29 = tpu.matmul %27, %28, %cst_21 {dimension_numbers = #tpu.dot_dimension_numbers<[1], [0], [0], [1], [0, 0, 1, 1], [], []>} : vector<16x32xf32>, vector<32x32xf32>, vector<16x32xf32> -> vector<16x32xf32>
    %c0_22 = arith.constant 0 : index
    %c0_23 = arith.constant 0 : index
    %30 = vector.load %arg9[%c0_22, %c0_23] : memref<1x32xf32, #tpu.memory_space<vmem>>, vector<1x32xf32>
    %31 = vector.broadcast %30 : vector<1x32xf32> to vector<16x32xf32>
    %32 = arith.addf %29, %31 : vector<16x32xf32>
    %33 = vector.shape_cast %32 : vector<16x32xf32> to vector<2x8x32xf32>
    %c0_24 = arith.constant 0 : index
    %c0_25 = arith.constant 0 : index
    %c0_26 = arith.constant 0 : index
    %34 = vector.load %arg10[%c0_24, %c0_25, %c0_26] : memref<2x8x32xf32, #tpu.memory_space<vmem>>, vector<2x8x32xf32>
    tpu.vector_store %arg10[%c0_24, %c0_25, %c0_26], %33 {strides = array<i32>} : memref<2x8x32xf32, #tpu.memory_space<vmem>>, vector<2x8x32xf32>,
    return
  }
  func.func @transform_0(%arg0: i32) -> (i32, i32, i32) {
    %c0_i32 = arith.constant 0 : i32
    %c0_i32_0 = arith.constant 0 : i32
    %c0_i32_1 = arith.constant 0 : i32
    return %arg0, %c0_i32, %c0_i32_0 : i32, i32, i32
  }
  func.func @transform_1(%arg0: i32) -> (i32, i32) {
    %c0_i32 = arith.constant 0 : i32
    %c0_i32_0 = arith.constant 0 : i32
    return %arg0, %c0_i32 : i32, i32
  }
  func.func @transform_2(%arg0: i32) -> (i32, i32) {
    %c0_i32 = arith.constant 0 : i32
    %c0_i32_0 = arith.constant 0 : i32
    return %arg0, %c0_i32 : i32, i32
  }
  func.func @transform_3(%arg0: i32) -> (i32, i32) {
    %c0_i32 = arith.constant 0 : i32
    %c0_i32_0 = arith.constant 0 : i32
    %c0_i32_1 = arith.constant 0 : i32
    return %c0_i32, %c0_i32_0 : i32, i32
  }
  func.func @transform_4(%arg0: i32) -> (i32, i32) {
    %c0_i32 = arith.constant 0 : i32
    %c0_i32_0 = arith.constant 0 : i32
    %c0_i32_1 = arith.constant 0 : i32
    return %c0_i32, %c0_i32_0 : i32, i32
  }
  func.func @transform_5(%arg0: i32) -> (i32, i32) {
    %c0_i32 = arith.constant 0 : i32
    %c0_i32_0 = arith.constant 0 : i32
    %c0_i32_1 = arith.constant 0 : i32
    return %c0_i32, %c0_i32_0 : i32, i32
  }
  func.func @transform_6(%arg0: i32) -> (i32, i32) {
    %c0_i32 = arith.constant 0 : i32
    %c0_i32_0 = arith.constant 0 : i32
    %c0_i32_1 = arith.constant 0 : i32
    return %c0_i32, %c0_i32_0 : i32, i32
  }
  func.func @transform_7(%arg0: i32) -> (i32, i32) {
    %c0_i32 = arith.constant 0 : i32
    %c0_i32_0 = arith.constant 0 : i32
    %c0_i32_1 = arith.constant 0 : i32
    return %c0_i32, %c0_i32_0 : i32, i32
  }
  func.func @transform_8(%arg0: i32) -> (i32, i32) {
    %c0_i32 = arith.constant 0 : i32
    %c0_i32_0 = arith.constant 0 : i32
    %c0_i32_1 = arith.constant 0 : i32
    return %c0_i32, %c0_i32_0 : i32, i32
  }
  func.func @transform_9(%arg0: i32) -> (i32, i32, i32) {
    %c0_i32 = arith.constant 0 : i32
    %c0_i32_0 = arith.constant 0 : i32
    %c0_i32_1 = arith.constant 0 : i32
    return %arg0, %c0_i32, %c0_i32_0 : i32, i32, i32
  }
}

</mosaic_0001>

<llo_original>
// kernel: tpu_custom_call.1
$region0: #{tpu_custom_call.1}
  #allocation0 [shape = 'u32[]', space=smem, size = 0x4, offset = 0x4, fixed_abs, tag = 'smem constant byte address 0x4 - core index']
  #allocation1 [shape = 'u32[72,128]{1,0:T(1,128)}', space=vmem, size = 0x9000, scoped, tag = 'internal scratch']
  %s0 = inlined_call_operand.hbm [shape: f32[2,8,32], index: 0, kind: input, shape index: {}]
  %s1 = inlined_call_operand.hbm [shape: f32[16,16], index: 1, kind: input, shape index: {}]
  %s2 = inlined_call_operand.hbm [shape: f32[16,16], index: 2, kind: input, shape index: {}]
  %s3 = inlined_call_operand.hbm [shape: f32[16,32], index: 3, kind: input, shape index: {}]
  %s4 = inlined_call_operand.vmem [shape: f32[1,32], index: 4, kind: input, shape index: {}]
  %s5 = inlined_call_operand.hbm [shape: f32[16,32], index: 5, kind: input, shape index: {}]
  %s6 = inlined_call_operand.vmem [shape: f32[1,32], index: 6, kind: input, shape index: {}]
  %s7 = inlined_call_operand.hbm [shape: f32[32,32], index: 7, kind: input, shape index: {}]
  %s8 = inlined_call_operand.vmem [shape: f32[1,32], index: 8, kind: input, shape index: {}]
  %s9 = inlined_call_operand.hbm [shape: f32[2,8,32], index: 9, kind: output, shape index: {}]
  %s10 = sld [smem:[#allocation0]]
  $region70: #{tpu_custom_call.1} parent=0
    _
  %s12 = ssub.s32 1, %s10
  %s13 = scalar_select 0, %s12, %s10
  $region1: #{tpu_custom_call.1} parent=0
    #allocation2 [shape = 'u8[8192]{0}', space=vmem, size = 0x2000, scoped, tag = 'input window, operand 0, single buffered']
    #allocation3 [shape = 's32[1]{0}', space=sflag, size = 0x4, scoped, tag = 'scoped memory for tpu_custom_call.1']
    #allocation4 [shape = 's32[1]{0}', space=sflag, size = 0x4, scoped, tag = 'scoped memory for tpu_custom_call.1']
    #allocation5 [shape = 'u8[8192]{0}', space=vmem, size = 0x2000, scoped, tag = 'input window, operand 1, single buffered']
    #allocation6 [shape = 's32[1]{0}', space=sflag, size = 0x4, scoped, tag = 'scoped memory for tpu_custom_call.1']
    #allocation7 [shape = 'u8[8192]{0}', space=vmem, size = 0x2000, scoped, tag = 'input window, operand 2, single buffered']
    #allocation8 [shape = 'u8[8192]{0}', space=vmem, size = 0x2000, scoped, tag = 'input window, operand 3, single buffered']
    #allocation9 [shape = 's32[1]{0}', space=sflag, size = 0x4, scoped, tag = 'scoped memory for tpu_custom_call.1']
    #allocation10 [shape = 'u8[8192]{0}', space=vmem, size = 0x2000, scoped, tag = 'input window, operand 5, single buffered']
    #allocation11 [shape = 'u8[16384]{0}', space=vmem, size = 0x4000, scoped, tag = 'input window, operand 7, single buffered']
    #allocation12 [shape = 's32[1]{0}', space=sflag, size = 0x4, scoped, tag = 'scoped memory for tpu_custom_call.1']
    #allocation13 [shape = 'u8[8192]{0}', space=vmem, size = 0x2000, scoped, tag = 'output window, operand 0, single buffered']
    %14 = vsyncpa [#allocation3], 0
    %15 = vsyncpa [#allocation6], 0
    %16 = vsyncpa [#allocation9], 0
    %17 = vsyncpa [#allocation12], 0
    %18 = vsyncpa [#allocation4], 0
    // Predicated region
    $region2: #{tpu_custom_call.1} parent=1 // pred_check
      _
    $region3: #{tpu_custom_call.1} parent=1 // pred_check_branch
      %20 = sbr.rel (0) target = $region5
    $region4: #{tpu_custom_call.1} parent=1 // pred_region
      %22 = vsyncadd [#allocation3], 0
      %s23 = sshll.u32 %s0, 4
      %s24 = int_to_ptr.hbm [resolvable:$true] %s23
      %s25 = sshll.u32 [#allocation2], 4
      %s26 = int_to_ptr.vmem [resolvable:$true] %s25
      %31 = dma.hbm_to_vmem [thread:$0]  %s24, 256, %s26, [#allocation3], 128, 128, 8
    $region5: #{tpu_custom_call.1} parent=1 // pred_fallthru
      _
    // Predicated region
    $region6: #{tpu_custom_call.1} parent=1 // pred_check
      _
    $region7: #{tpu_custom_call.1} parent=1 // pred_check_branch
      %33 = sbr.rel (0) target = $region9
    $region8: #{tpu_custom_call.1} parent=1 // pred_region
      %35 = vsyncadd [#allocation6], 0
      %s36 = sshll.u32 %s1, 4
      %s37 = int_to_ptr.hbm [resolvable:$true] %s36
      %s38 = sshll.u32 [#allocation5], 4
      %s39 = int_to_ptr.vmem [resolvable:$true] %s38
      %44 = dma.hbm_to_vmem [thread:$0]  %s37, 256, %s39, [#allocation6], 128, 128, 8
    $region9: #{tpu_custom_call.1} parent=1 // pred_fallthru
      _
    // Predicated region
    $region10: #{tpu_custom_call.1} parent=1 // pred_check
      _
    $region11: #{tpu_custom_call.1} parent=1 // pred_check_branch
      %46 = sbr.rel (0) target = $region13
    $region12: #{tpu_custom_call.1} parent=1 // pred_region
      %48 = vsyncadd [#allocation6], 0
      %s49 = sshll.u32 %s2, 4
      %s50 = int_to_ptr.hbm [resolvable:$true] %s49
      %s51 = sshll.u32 [#allocation7], 4
      %s52 = int_to_ptr.vmem [resolvable:$true] %s51
      %57 = dma.hbm_to_vmem [thread:$0]  %s50, 256, %s52, [#allocation6], 128, 128, 8
    $region13: #{tpu_custom_call.1} parent=1 // pred_fallthru
      _
    // Predicated region
    $region14: #{tpu_custom_call.1} parent=1 // pred_check
      _
    $region15: #{tpu_custom_call.1} parent=1 // pred_check_branch
      %59 = sbr.rel (0) target = $region17
    $region16: #{tpu_custom_call.1} parent=1 // pred_region
      %61 = vsyncadd [#allocation9], 0
      %s62 = sshll.u32 %s3, 4
      %s63 = int_to_ptr.hbm [resolvable:$true] %s62
      %s64 = sshll.u32 [#allocation8], 4
      %s65 = int_to_ptr.vmem [resolvable:$true] %s64
      %70 = dma.hbm_to_vmem [thread:$0]  %s63, 256, %s65, [#allocation9], 128, 128, 8
    $region17: #{tpu_custom_call.1} parent=1 // pred_fallthru
      _
    // Predicated region
    $region18: #{tpu_custom_call.1} parent=1 // pred_check
      _
    $region19: #{tpu_custom_call.1} parent=1 // pred_check_branch
      %72 = sbr.rel (0) target = $region21
    $region20: #{tpu_custom_call.1} parent=1 // pred_region
      _
    $region21: #{tpu_custom_call.1} parent=1 // pred_fallthru
      _
    // Predicated region
    $region22: #{tpu_custom_call.1} parent=1 // pred_check
      _
    $region23: #{tpu_custom_call.1} parent=1 // pred_check_branch
      %74 = sbr.rel (0) target = $region25
    $region24: #{tpu_custom_call.1} parent=1 // pred_region
      %76 = vsyncadd [#allocation9], 0
      %s77 = sshll.u32 %s5, 4
      %s78 = int_to_ptr.hbm [resolvable:$true] %s77
      %s79 = sshll.u32 [#allocation10], 4
      %s80 = int_to_ptr.vmem [resolvable:$true] %s79
      %85 = dma.hbm_to_vmem [thread:$0]  %s78, 256, %s80, [#allocation9], 128, 128, 8
    $region25: #{tpu_custom_call.1} parent=1 // pred_fallthru
      _
    // Predicated region
    $region26: #{tpu_custom_call.1} parent=1 // pred_check
      _
    $region27: #{tpu_custom_call.1} parent=1 // pred_check_branch
      %87 = sbr.rel (0) target = $region29
    $region28: #{tpu_custom_call.1} parent=1 // pred_region
      _
    $region29: #{tpu_custom_call.1} parent=1 // pred_fallthru
      _
    // Predicated region
    $region30: #{tpu_custom_call.1} parent=1 // pred_check
      _
    $region31: #{tpu_custom_call.1} parent=1 // pred_check_branch
      %89 = sbr.rel (0) target = $region33
    $region32: #{tpu_custom_call.1} parent=1 // pred_region
      %91 = vsyncadd [#allocation12], 0
      %s92 = sshll.u32 %s7, 4
      %s93 = int_to_ptr.hbm [resolvable:$true] %s92
      %s94 = sshll.u32 [#allocation11], 4
      %s95 = int_to_ptr.vmem [resolvable:$true] %s94
      %100 = dma.hbm_to_vmem [thread:$0]  %s93, 512, %s95, [#allocation12], 128, 128, 8
    $region33: #{tpu_custom_call.1} parent=1 // pred_fallthru
      _
    // Predicated region
    $region34: #{tpu_custom_call.1} parent=1 // pred_check
      _
    $region35: #{tpu_custom_call.1} parent=1 // pred_check_branch
      %102 = sbr.rel (0) target = $region37
    $region36: #{tpu_custom_call.1} parent=1 // pred_region
      _
    $region37: #{tpu_custom_call.1} parent=1 // pred_fallthru
      _
    // Predicated region
    $region38: #{tpu_custom_call.1} parent=1 // pred_check
      _
    $region39: #{tpu_custom_call.1} parent=1 // pred_check_branch
      %104 = sbr.rel (0) target = $region41
    $region40: #{tpu_custom_call.1} parent=1 // pred_region
      %106 = dma.done [#allocation3], 256
    $region41: #{tpu_custom_call.1} parent=1 // pred_fallthru
      _
    // Predicated region
    $region42: #{tpu_custom_call.1} parent=1 // pred_check
      _
    $region43: #{tpu_custom_call.1} parent=1 // pred_check_branch
      %108 = sbr.rel (0) target = $region45
    $region44: #{tpu_custom_call.1} parent=1 // pred_region
      %110 = dma.done [#allocation6], 256
    $region45: #{tpu_custom_call.1} parent=1 // pred_fallthru
      _
    // Predicated region
    $region46: #{tpu_custom_call.1} parent=1 // pred_check
      _
    $region47: #{tpu_custom_call.1} parent=1 // pred_check_branch
      %112 = sbr.rel (0) target = $region49
    $region48: #{tpu_custom_call.1} parent=1 // pred_region
      %114 = dma.done [#allocation6], 256
    $region49: #{tpu_custom_call.1} parent=1 // pred_fallthru
      _
    // Predicated region
    $region50: #{tpu_custom_call.1} parent=1 // pred_check
      _
    $region51: #{tpu_custom_call.1} parent=1 // pred_check_branch
      %116 = sbr.rel (0) target = $region53
    $region52: #{tpu_custom_call.1} parent=1 // pred_region
      %118 = dma.done [#allocation9], 256
    $region53: #{tpu_custom_call.1} parent=1 // pred_fallthru
      _
    // Predicated region
    $region54: #{tpu_custom_call.1} parent=1 // pred_check
      _
    $region55: #{tpu_custom_call.1} parent=1 // pred_check_branch
      %120 = sbr.rel (0) target = $region57
    $region56: #{tpu_custom_call.1} parent=1 // pred_region
      %122 = dma.done [#allocation9], 256
    $region57: #{tpu_custom_call.1} parent=1 // pred_fallthru
      _
    // Predicated region
    $region58: #{tpu_custom_call.1} parent=1 // pred_check
      _
    $region59: #{tpu_custom_call.1} parent=1 // pred_check_branch
      %124 = sbr.rel (0) target = $region61
    $region60: #{tpu_custom_call.1} parent=1 // pred_region
      %126 = dma.done [#allocation12], 512
    $region61: #{tpu_custom_call.1} parent=1 // pred_fallthru
      _
    %v127 = vld [vmem:[#allocation5] sm:$0xff]
    %v128 = vld [vmem:[#allocation5 + $0x8] sm:$0xff]
    %v129 = vld [vmem:[#allocation8] sm:$0xff]
    %v130 = vld [vmem:[#allocation8 + $0x8] sm:$0xff]
    %v131 = vld [vmem:[%s4] sm:$0x1]
    %v133 = vperm.slane %v131, 0
    %vm135 = vcmask 130048
    %v137 = vsel %vm135, %v127, 0
    %v140 = vsel %vm135, %v128, 0
    %142 = vmatpush.msra.mxu0 0.0
    %143 = vmatpush.msra.mxu0 0.0
    %144 = vmatpush.msra.mxu0 0.0
    %145 = vmatpush.msra.mxu0 0.0
    %146 = vmatpush.msra.mxu0 0.0
    %147 = vmatpush.msra.mxu0 0.0
    %148 = vmatpush.msra.mxu0 0.0
    %149 = vmatpush.msra.mxu0 0.0
    %150 = vmatpush.msra.mxu0 0.0
    %151 = vmatpush.msra.mxu0 0.0
    %152 = vmatpush.msra.mxu0 0.0
    %153 = vmatpush.msra.mxu0 0.0
    %154 = vmatpush.msra.mxu0 0.0
    %155 = vmatpush.msra.mxu0 0.0
    %156 = vmatpush.msra.mxu0 %v130
    %157 = vmatpush.msra.mxu0 %v129
    %158 = vmatmul.f32.gmra.mxu0 %v137
    %v159 = vpop.f32.mrf.mxu0
    %v160 = vadd.f32 %v133, %v159
    %161 = vmatmul.f32.gmra.mxu0 %v140
    %v162 = vpop.f32.mrf.mxu0
    %v163 = vadd.f32 %v133, %v162
    %164 = vdwg.mxu0
    %v165 = vld [vmem:[#allocation7] sm:$0xff]
    %v166 = vld [vmem:[#allocation7 + $0x8] sm:$0xff]
    %v167 = vld [vmem:[#allocation10] sm:$0xff]
    %v168 = vld [vmem:[#allocation10 + $0x8] sm:$0xff]
    %v169 = vld [vmem:[%s6] sm:$0x1]
    %v171 = vperm.slane %v169, 0
    %v174 = vsel %vm135, %v165, 0
    %v177 = vsel %vm135, %v166, 0
    %179 = vmatpush.msra.mxu0 0.0
    %180 = vmatpush.msra.mxu0 0.0
    %181 = vmatpush.msra.mxu0 0.0
    %182 = vmatpush.msra.mxu0 0.0
    %183 = vmatpush.msra.mxu0 0.0
    %184 = vmatpush.msra.mxu0 0.0
    %185 = vmatpush.msra.mxu0 0.0
    %186 = vmatpush.msra.mxu0 0.0
    %187 = vmatpush.msra.mxu0 0.0
    %188 = vmatpush.msra.mxu0 0.0
    %189 = vmatpush.msra.mxu0 0.0
    %190 = vmatpush.msra.mxu0 0.0
    %191 = vmatpush.msra.mxu0 0.0
    %192 = vmatpush.msra.mxu0 0.0
    %193 = vmatpush.msra.mxu0 %v168
    %194 = vmatpush.msra.mxu0 %v167
    %195 = vmatmul.f32.gmra.mxu0 %v174
    %v196 = vpop.f32.mrf.mxu0
    %v197 = vadd.f32 %v171, %v196
    %198 = vmatmul.f32.gmra.mxu0 %v177
    %v199 = vpop.f32.mrf.mxu0
    %v200 = vadd.f32 %v171, %v199
    %201 = vdwg.mxu0
    %v202 = vld [vmem:[#allocation2] sm:$0xff]
    %v203 = vld [vmem:[#allocation2 + $0x8] sm:$0xff]
    %vm204 = vcmask 261120
    %v206 = vsel %vm204, %v202, 0
    %v209 = vsel %vm204, %v160, 0
    %211 = vmatpush.xpose.msra.mxu0 0.0
    %212 = vmatpush.xpose.msra.mxu0 0.0
    %213 = vmatpush.xpose.msra.mxu0 0.0
    %214 = vmatpush.xpose.msra.mxu0 0.0
    %215 = vmatpush.xpose.msra.mxu0 0.0
    %216 = vmatpush.xpose.msra.mxu0 0.0
    %217 = vmatpush.xpose.msra.mxu0 0.0
    %218 = vmatpush.xpose.msra.mxu0 0.0
    %219 = vmatpush.xpose.msra.mxu0 0.0
    %220 = vmatpush.xpose.msra.mxu0 0.0
    %221 = vmatpush.xpose.msra.mxu0 0.0
    %222 = vmatpush.xpose.msra.mxu0 0.0
    %223 = vmatpush.xpose.msra.mxu0 0.0
    %224 = vmatpush.xpose.msra.mxu0 0.0
    %225 = vmatpush.xpose.msra.mxu0 0.0
    %226 = vmatpush.xpose.msra.mxu0 %v209
    %227 = vmatmul.f32.gmra.mxu0 %v206
    %v228 = vpop.f32.mrf.mxu0
    %v229 = vadd.f32 0.0, %v228
    %230 = vdwg.mxu0
    %v232 = vsel %vm204, %v203, 0
    %v235 = vsel %vm204, %v163, 0
    %237 = vmatpush.xpose.msra.mxu0 0.0
    %238 = vmatpush.xpose.msra.mxu0 0.0
    %239 = vmatpush.xpose.msra.mxu0 0.0
    %240 = vmatpush.xpose.msra.mxu0 0.0
    %241 = vmatpush.xpose.msra.mxu0 0.0
    %242 = vmatpush.xpose.msra.mxu0 0.0
    %243 = vmatpush.xpose.msra.mxu0 0.0
    %244 = vmatpush.xpose.msra.mxu0 0.0
    %245 = vmatpush.xpose.msra.mxu0 0.0
    %246 = vmatpush.xpose.msra.mxu0 0.0
    %247 = vmatpush.xpose.msra.mxu0 0.0
    %248 = vmatpush.xpose.msra.mxu0 0.0
    %249 = vmatpush.xpose.msra.mxu0 0.0
    %250 = vmatpush.xpose.msra.mxu0 0.0
    %251 = vmatpush.xpose.msra.mxu0 0.0
    %252 = vmatpush.xpose.msra.mxu0 %v235
    %253 = vmatmul.f32.gmra.mxu0 %v232
    %v254 = vpop.f32.mrf.mxu0
    %v255 = vadd.f32 0.0, %v254
    %256 = vdwg.mxu0
    %vm257 = vcmask 64512
    %v258 = vsel %vm257, %v229, -inf
    %259 = vmax.xlane.f32.xlu0 %v258
    %v260 = vpop.xlane.xlu0 %259
    %v261 = vsel %vm257, %v255, -inf
    %262 = vmax.xlane.f32.xlu0 %v261
    %v263 = vpop.xlane.xlu0 %262
    %v264 = vsub.f32 %v229, %v260
    %v265 = vsub.f32 %v255, %v263
    %v266 = vmul.f32 %v264, 1.442695
    %v267 = vpow.pop %v266
    %v268 = vmul.f32 %v265, 1.442695
    %v269 = vpow.pop %v268
    %v270 = vsel %vm257, %v267, 0.0
    %271 = vadd.xlane.f32.xlu0 %v270
    %v272 = vpop.xlane.xlu0 %271
    %v273 = vsel %vm257, %v269, 0.0
    %274 = vadd.xlane.f32.xlu0 %v273
    %v275 = vpop.xlane.xlu0 %274
    %v276 = vrcp.pop %v272
    %v277 = vmul.f32 %v272, %v276
    %v278 = vsub.f32 1.0, %v277
    %v279 = vmul.f32 %v276, %v278
    %v280 = vadd.f32 %v276, %v279
    %vm281 = vweird.f32 %v272
    %vm282 = vweird.f32 %v276
    %vm283 = vmor %vm281, %vm282
    %v284 = vsel %vm283, %v276, %v280
    %v285 = vand.u32 2147483647, %v272
    %vm286 = vcmp.eq.f32.partialorder %v285, 8.507059e+37
    %v287 = vand.u32 %v272, 2147483648
    %v288 = vor.u32 1.1754944e-38, %v287
    %v289 = vsel %vm286, %v288, %v284
    %v290 = vrcp.pop %v275
    %v291 = vmul.f32 %v275, %v290
    %v292 = vsub.f32 1.0, %v291
    %v293 = vmul.f32 %v290, %v292
    %v294 = vadd.f32 %v290, %v293
    %vm295 = vweird.f32 %v275
    %vm296 = vweird.f32 %v290
    %vm297 = vmor %vm295, %vm296
    %v298 = vsel %vm297, %v290, %v294
    %v299 = vand.u32 2147483647, %v275
    %vm300 = vcmp.eq.f32.partialorder %v299, 8.507059e+37
    %v301 = vand.u32 %v275, 2147483648
    %v302 = vor.u32 1.1754944e-38, %v301
    %v303 = vsel %vm300, %v302, %v298
    %v304 = vmul.f32 %v267, %v289
    %v305 = vmul.f32 %v269, %v303
    %v307 = vsel %vm257, %v304, 0
    %309 = vmatpush.msra.mxu0 0.0
    %310 = vmatpush.msra.mxu0 0.0
    %311 = vmatpush.msra.mxu0 0.0
    %312 = vmatpush.msra.mxu0 0.0
    %313 = vmatpush.msra.mxu0 0.0
    %314 = vmatpush.msra.mxu0 0.0
    %315 = vmatpush.msra.mxu0 0.0
    %316 = vmatpush.msra.mxu0 0.0
    %317 = vmatpush.msra.mxu0 0.0
    %318 = vmatpush.msra.mxu0 0.0
    %319 = vmatpush.msra.mxu0 0.0
    %320 = vmatpush.msra.mxu0 0.0
    %321 = vmatpush.msra.mxu0 0.0
    %322 = vmatpush.msra.mxu0 0.0
    %323 = vmatpush.msra.mxu0 0.0
    %324 = vmatpush.msra.mxu0 %v197
    %325 = vmatmul.f32.gmra.mxu0 %v307
    %v326 = vpop.f32.mrf.mxu0
    %v327 = vadd.f32 0.0, %v326
    %328 = vdwg.mxu0
    %v330 = vsel %vm257, %v305, 0
    %332 = vmatpush.msra.mxu0 0.0
    %333 = vmatpush.msra.mxu0 0.0
    %334 = vmatpush.msra.mxu0 0.0
    %335 = vmatpush.msra.mxu0 0.0
    %336 = vmatpush.msra.mxu0 0.0
    %337 = vmatpush.msra.mxu0 0.0
    %338 = vmatpush.msra.mxu0 0.0
    %339 = vmatpush.msra.mxu0 0.0
    %340 = vmatpush.msra.mxu0 0.0
    %341 = vmatpush.msra.mxu0 0.0
    %342 = vmatpush.msra.mxu0 0.0
    %343 = vmatpush.msra.mxu0 0.0
    %344 = vmatpush.msra.mxu0 0.0
    %345 = vmatpush.msra.mxu0 0.0
    %346 = vmatpush.msra.mxu0 0.0
    %347 = vmatpush.msra.mxu0 %v200
    %348 = vmatmul.f32.gmra.mxu0 %v330
    %v349 = vpop.f32.mrf.mxu0
    %v350 = vadd.f32 0.0, %v349
    %351 = vdwg.mxu0
    %v352 = vld [vmem:[#allocation11] sm:$0xff]
    %v353 = vld [vmem:[#allocation11 + $0x8] sm:$0xff]
    %v354 = vld [vmem:[#allocation11 + $0x10] sm:$0xff]
    %v355 = vld [vmem:[#allocation11 + $0x18] sm:$0xff]
    %v356 = vld [vmem:[%s8] sm:$0x1]
    %v358 = vperm.slane %v356, 0
    %v361 = vsel %vm204, %v327, 0
    %v364 = vsel %vm204, %v350, 0
    %366 = vmatpush.msra.mxu0 0.0
    %367 = vmatpush.msra.mxu0 0.0
    %368 = vmatpush.msra.mxu0 0.0
    %369 = vmatpush.msra.mxu0 0.0
    %370 = vmatpush.msra.mxu0 0.0
    %371 = vmatpush.msra.mxu0 0.0
    %372 = vmatpush.msra.mxu0 0.0
    %373 = vmatpush.msra.mxu0 0.0
    %374 = vmatpush.msra.mxu0 0.0
    %375 = vmatpush.msra.mxu0 0.0
    %376 = vmatpush.msra.mxu0 0.0
    %377 = vmatpush.msra.mxu0 0.0
    %378 = vmatpush.msra.mxu0 %v355
    %379 = vmatpush.msra.mxu0 %v354
    %380 = vmatpush.msra.mxu0 %v353
    %381 = vmatpush.msra.mxu0 %v352
    %382 = vmatmul.f32.gmra.mxu0 %v361
    %v383 = vpop.f32.mrf.mxu0
    %v384 = vadd.f32 %v358, %v383
    %385 = vmatmul.f32.gmra.mxu0 %v364
    %v386 = vpop.f32.mrf.mxu0
    %v387 = vadd.f32 %v358, %v386
    %388 = vdwg.mxu0
    %389 = vst.msk [vmem:[#allocation13] sm:$0xff] %vm204, %v384
    %390 = vst.msk [vmem:[#allocation13 + $0x8] sm:$0xff] %vm204, %v387
    // Predicated region
    $region62: #{tpu_custom_call.1} parent=1 // pred_check
      _
    $region63: #{tpu_custom_call.1} parent=1 // pred_check_branch
      %392 = sbr.rel (0) target = $region65
    $region64: #{tpu_custom_call.1} parent=1 // pred_region
      %394 = vsyncadd [#allocation4], 0
      %s395 = sshll.u32 [#allocation13], 4
      %s396 = int_to_ptr.vmem [resolvable:$true] %s395
      %s397 = sshll.u32 %s9, 4
      %s398 = int_to_ptr.hbm [resolvable:$true] %s397
      %403 = dma.vmem_to_hbm [thread:$0]  %s396, 256, %s398, [#allocation4], 128, 128, 8
    $region65: #{tpu_custom_call.1} parent=1 // pred_fallthru
      _
    // Predicated region
    $region66: #{tpu_custom_call.1} parent=1 // pred_check
      _
    $region67: #{tpu_custom_call.1} parent=1 // pred_check_branch
      %405 = sbr.rel (0) target = $region69
    $region68: #{tpu_custom_call.1} parent=1 // pred_region
      %407 = dma.done [#allocation4], 256
    $region69: #{tpu_custom_call.1} parent=1 // pred_fallthru
      _
    %408 = vsyncpa [#allocation3], 1
    %409 = vsyncpa [#allocation6], 1
    %410 = vsyncpa [#allocation9], 1
    %411 = vsyncpa [#allocation12], 1
    %412 = vsyncpa [#allocation4], 1

</llo_original>
